<compile_context>
chip_gen: v7x
topology: tpu7x:2x2x1
jax: 0.10.0
libtpu: 0.0.40
codegen_flags: <defaults>
</compile_context>

<pallas_src>
import jax
import jax.numpy as jnp
from jax.experimental import pallas as pl
from jax.experimental.pallas import tpu as pltpu


def _round_up(a, m):
    return (a + m - 1) // m * m


def _chip_defaults():
    """(tile_b, tile_k, vmem_limit_bytes) tuned per TPU generation."""
    kind = ""
    try:
        kind = jax.devices()[0].device_kind.lower()
    except Exception:
        pass
    if "v7" in kind:                                   # 64 MiB VMEM / TC
        return 512, 512, 54 * 1024 * 1024
    if "v6" in kind:                                   # trillium, 128 MiB VMEM
        return 1024, 1024, 100 * 1024 * 1024
    if "v5e" in kind or "v5 lite" in kind or "v5lite" in kind:
        return 256, 1024, 96 * 1024 * 1024
    if "v5" in kind:                                   # v5p
        return 512, 1024, 96 * 1024 * 1024
    return 256, 512, 48 * 1024 * 1024                  # unknown: known-good


def textnet_cluster_kernel(
    x_ref,                 # (TB, Y)            bf16 (pre-cast in wrapper)
    w0_ref, b0_ref,        # (Y, TK) bf16, (1, TK) f32
    wcat_ref, bcat_ref,    # (TK, M2p+BITp) bf16, (1, M2p+BITp) f32  = [W1|Wc0]
    wc1_ref, bc1_ref,      # (M2p, BITp) bf16, (1, BITp) f32
    out_ref,               # (TB, 2*BITp) f32   packed [cluster0 | cluster1]
    acc_ref,               # VMEM f32 scratch: (TB, M2p+BITp)
):
    k = pl.program_id(1)
    nk = pl.num_programs(1)
    m2p = wc1_ref.shape[0]     # padded mid_num2
    bitp = wc1_ref.shape[1]    # padded bit width (multiple of 128)
    wdt = w0_ref.dtype

    @pl.when(k == 0)
    def _init():
        acc_ref[...] = jnp.zeros_like(acc_ref)

    # l0 chunk = ReLU(x @ W0[:, k*tk:(k+1)*tk] + b0_chunk)   (Dropout p=0 == id)
    l0 = jnp.dot(x_ref[...], w0_ref[...],
                 preferred_element_type=jnp.float32) + b0_ref[...]
    l0 = jnp.maximum(l0, 0.0).astype(wdt)

    # Single fused partial sum over the hidden (M1) reduction axis:
    #   acc[:, :M2p]  accumulates pre-bias l1
    #   acc[:, M2p:]  accumulates pre-bias/pre-tanh cluster0
    acc_ref[...] += jnp.dot(l0, wcat_ref[...], preferred_element_type=jnp.float32)

    @pl.when(k == nk - 1)
    def _finalize():
        z = acc_ref[...] + bcat_ref[...]
        l1 = jnp.maximum(z[:, :m2p], 0.0)
        c0 = jnp.tanh(z[:, m2p:])
        c1 = jnp.tanh(
            jnp.dot(l1.astype(wdt), wc1_ref[...],
                    preferred_element_type=jnp.float32) + bc1_ref[...]
        )

        # F.normalize(p=2, dim=1): x / max(||x||, eps) == x * rsqrt(max(||x||^2, eps^2))
        # Padded columns are exactly 0 (zero-padded weights & biases -> tanh(0)=0),
        # so they do not perturb the norms.
        eps = 1e-12
        s0 = jnp.sum(c0 * c0, axis=-1, keepdims=True)
        s1 = jnp.sum(c1 * c1, axis=-1, keepdims=True)
        c0 = c0 * jax.lax.rsqrt(jnp.maximum(s0, eps * eps))
        c1 = c1 * jax.lax.rsqrt(jnp.maximum(s1, eps * eps))

        # Two 128-lane-aligned, unmasked stores.
        out_ref[:, :bitp] = c0.astype(out_ref.dtype)
        out_ref[:, bitp:] = c1.astype(out_ref.dtype)


def textnet_cluster_forward(x, params, *, tile_b=None, tile_k=None,
                            vmem_limit_bytes=None, weight_dtype=jnp.bfloat16):
    """x: (B, y_dim) float32.  Returns dict mirroring the PyTorch module."""
    B, Y = x.shape
    w0, b0 = params["w0"], params["b0"]
    w1, b1 = params["w1"], params["b1"]
    wc0, bc0 = params["wc0"], params["bc0"]
    wc1, bc1 = params["wc1"], params["bc1"]
    M1, M2, BIT = w0.shape[1], w1.shape[1], wc0.shape[1]

    auto_tb, auto_tk, auto_vmem = _chip_defaults()
    tile_b = auto_tb if tile_b is None else tile_b
    tile_k = auto_tk if tile_k is None else tile_k
    vmem_limit_bytes = auto_vmem if vmem_limit_bytes is None else vmem_limit_bytes

    # ---- batch tiling: pad B up so any batch size works ----
    tb = min(tile_b, _round_up(B, 8))
    B_pad = _round_up(B, tb)

    # ---- K-tiling over the hidden dim M1 (chunks must be lane-aligned) ----
    if M1 <= tile_k:
        tk = M1
        M1_pad = M1
    else:
        tk = _round_up(tile_k, 128)
        M1_pad = _round_up(M1, tk)

    # ---- lane padding for the fused output dims ----
    M2_pad = _round_up(M2, 128)
    BIT_pad = _round_up(BIT, 128)
    N_cat = M2_pad + BIT_pad

    # ---- zero-pad operands (padded rows/cols contribute exactly 0) ----
    if B_pad != B:
        x = jnp.pad(x, ((0, B_pad - B), (0, 0)))
    if M1_pad != M1:
        dp = M1_pad - M1
        w0 = jnp.pad(w0, ((0, 0), (0, dp)))
        b0 = jnp.pad(b0, ((0, 0), (0, dp)))
        w1 = jnp.pad(w1, ((0, dp), (0, 0)))
        wc0 = jnp.pad(wc0, ((0, dp), (0, 0)))
    if M2_pad != M2:
        dp = M2_pad - M2
        w1 = jnp.pad(w1, ((0, 0), (0, dp)))
        b1 = jnp.pad(b1, ((0, 0), (0, dp)))
        wc1 = jnp.pad(wc1, ((0, dp), (0, 0)))
    if BIT_pad != BIT:
        dp = BIT_pad - BIT
        wc0 = jnp.pad(wc0, ((0, 0), (0, dp)))
        bc0 = jnp.pad(bc0, ((0, 0), (0, dp)))
        wc1 = jnp.pad(wc1, ((0, 0), (0, dp)))
        bc1 = jnp.pad(bc1, ((0, 0), (0, dp)))

    # ---- fuse Wc0 into the W1 matmul:  [W1 | Wc0],  [b1 | bc0] ----
    w_cat = jnp.concatenate([w1, wc0], axis=1)          # (M1_pad, N_cat)
    b_cat = jnp.concatenate([b1, bc0], axis=1)          # (1, N_cat)

    # ---- weights/activations streamed in bf16; biases & accumulation f32 ----
    x = x.astype(weight_dtype)
    w0 = w0.astype(weight_dtype)
    w_cat = w_cat.astype(weight_dtype)
    wc1 = wc1.astype(weight_dtype)
    b0 = b0.astype(jnp.float32)
    b_cat = b_cat.astype(jnp.float32)
    bc1 = bc1.astype(jnp.float32)

    nb = B_pad // tb
    nk = M1_pad // tk
    grid = (nb, nk)

    # Streamed-per-batch-tile weights (W0, b0, W_cat, b_cat) count nb times;
    # the constant-index operands (Wc1, bc1) are fetched once.
    itw = jnp.dtype(weight_dtype).itemsize
    streamed = (w0.size + w_cat.size) * itw + (b0.size + b_cat.size) * 4
    bytes_accessed = (
        x.size * x.dtype.itemsize
        + nb * streamed
        + wc1.size * itw + bc1.size * 4
        + B_pad * 2 * BIT_pad * 4
    )
    flops = 2 * B_pad * (Y * M1_pad + M1_pad * N_cat + M2_pad * BIT_pad)
    cost = pl.CostEstimate(
        flops=int(flops),
        transcendentals=int(2 * B_pad * BIT_pad + 2 * B_pad),
        bytes_accessed=int(bytes_accessed),
    )

    out = pl.pallas_call(
        textnet_cluster_kernel,
        out_shape=jax.ShapeDtypeStruct((B_pad, 2 * BIT_pad), jnp.float32),
        grid_spec=pltpu.PrefetchScalarGridSpec(
            num_scalar_prefetch=0,
            grid=grid,
            in_specs=[
                pl.BlockSpec((tb, Y),       lambda i, k: (i, 0)),   # x
                pl.BlockSpec((Y, tk),       lambda i, k: (0, k)),   # W0 chunk
                pl.BlockSpec((1, tk),       lambda i, k: (0, k)),   # b0 chunk
                pl.BlockSpec((tk, N_cat),   lambda i, k: (k, 0)),   # [W1|Wc0] chunk
                pl.BlockSpec((1, N_cat),    lambda i, k: (0, 0)),   # [b1|bc0]
                pl.BlockSpec((M2_pad, BIT_pad), lambda i, k: (0, 0)),  # Wc1
                pl.BlockSpec((1, BIT_pad),  lambda i, k: (0, 0)),   # bc1
            ],
            out_specs=pl.BlockSpec((tb, 2 * BIT_pad), lambda i, k: (i, 0)),
            scratch_shapes=[
                pltpu.VMEM((tb, N_cat), jnp.float32),   # fused l1 / cluster0 acc
            ],
        ),
        compiler_params=pltpu.CompilerParams(
            dimension_semantics=("parallel", "arbitrary"),
            vmem_limit_bytes=int(vmem_limit_bytes),
        ),
        cost_estimate=cost,
    )(x, w0, b0, w_cat, b_cat, wc1, bc1)

    c0 = out[:B, :BIT]
    c1 = out[:B, BIT_pad:BIT_pad + BIT]
    hash_results = {"level0": c0, "level1": c0, "level2": c1, "level3": c1}
    return {"hash_codes": hash_results}


def init_params(key, y_dim, bit, mid1, mid2):
    """Deterministic synthetic params.  Weights stored as (in, out)."""
    ks = jax.random.split(key, 8)

    def lin(kw, kb, fan_in, fan_out):
        bound = 1.0 / jnp.sqrt(fan_in)
        w = jax.random.uniform(kw, (fan_in, fan_out), jnp.float32, -bound, bound)
        b = jax.random.uniform(kb, (1, fan_out), jnp.float32, -bound, bound)
        return w, b

    w0, b0 = lin(ks[0], ks[1], y_dim, mid1)
    w1, b1 = lin(ks[2], ks[3], mid1, mid2)
    wc0, bc0 = lin(ks[4], ks[5], mid1, bit)
    wc1, bc1 = lin(ks[6], ks[7], mid2, bit)
    return dict(w0=w0, b0=b0, w1=w1, b1=b1, wc0=wc0, bc0=bc0, wc1=wc1, bc1=bc1)


def reference_forward(x, p, weight_dtype=jnp.bfloat16):
    """Pure-JAX reference mirroring the PyTorch forward with the same bf16
    weight-streaming / f32-accumulation numerics as the kernel."""
    wd = weight_dtype
    xb = x.astype(wd)
    l0 = jnp.maximum(
        jnp.dot(xb, p["w0"].astype(wd), preferred_element_type=jnp.float32) + p["b0"], 0.0)
    l0b = l0.astype(wd)
    l1 = jnp.maximum(
        jnp.dot(l0b, p["w1"].astype(wd), preferred_element_type=jnp.float32) + p["b1"], 0.0)
    c0 = jnp.tanh(
        jnp.dot(l0b, p["wc0"].astype(wd), preferred_element_type=jnp.float32) + p["bc0"])
    c1 = jnp.tanh(
        jnp.dot(l1.astype(wd), p["wc1"].astype(wd), preferred_element_type=jnp.float32)
        + p["bc1"])
    eps = 1e-12
    c0 = c0 / jnp.maximum(jnp.linalg.norm(c0, axis=1, keepdims=True), eps)
    c1 = c1 / jnp.maximum(jnp.linalg.norm(c1, axis=1, keepdims=True), eps)
    return c0, c1


if __name__ == "__main__":
    # Small shapes consistent with the module (y_dim tags -> bit codes).
    # B=12 exercises batch padding; the explicit tile_b=8 / tile_k=128 call
    # exercises multiple batch tiles and the K-reduction accumulator path;
    # the default call exercises the per-chip auto-config path.
    B, Y_DIM, BIT = 12, 32, 16
    MID1, MID2 = 384, 256   # small stand-ins for the default 8192/8192

    key = jax.random.PRNGKey(0)
    kx, kp = jax.random.split(key)
    x = jax.random.normal(kx, (B, Y_DIM), jnp.float32)
    params = init_params(kp, Y_DIM, BIT, MID1, MID2)

    out_small = textnet_cluster_forward(x, params, tile_b=8, tile_k=128)
    out_auto = textnet_cluster_forward(x, params)
    jax.block_until_ready(out_small["hash_codes"]["level0"])
    jax.block_until_ready(out_auto["hash_codes"]["level0"])

    # Correctness check against the pure-JAX reference (same bf16 weights).
    c0_ref, c1_ref = reference_forward(x, params)
    for out in (out_small, out_auto):
        hc = out["hash_codes"]
        assert jnp.allclose(hc["level0"], c0_ref, atol=2e-3, rtol=2e-3)
        assert jnp.allclose(hc["level1"], c0_ref, atol=2e-3, rtol=2e-3)
        assert jnp.allclose(hc["level2"], c1_ref, atol=2e-3, rtol=2e-3)
        assert jnp.allclose(hc["level3"], c1_ref, atol=2e-3, rtol=2e-3)

    print("KERNEL_OK")
</pallas_src>

<mosaic_0001>
module attributes {stable_mosaic.version = 11 : i64} {
  func.func @textnet_cluster_kernel(%arg0: i32, %arg1: i32, %arg2: memref<8x32xbf16, #tpu.memory_space<vmem>>, %arg3: memref<32x128xbf16, #tpu.memory_space<vmem>>, %arg4: memref<1x128xf32, #tpu.memory_space<vmem>>, %arg5: memref<128x384xbf16, #tpu.memory_space<vmem>>, %arg6: memref<1x384xf32, #tpu.memory_space<vmem>>, %arg7: memref<256x128xbf16, #tpu.memory_space<vmem>>, %arg8: memref<1x128xf32, #tpu.memory_space<vmem>>, %arg9: memref<8x256xf32, #tpu.memory_space<vmem>>, %arg10: memref<8x384xf32, #tpu.memory_space<vmem>>) attributes {dimension_semantics = [#tpu.dimension_semantics<parallel>, #tpu.dimension_semantics<arbitrary>], iteration_bounds = array<i64: 2, 3>, scalar_prefetch = 0 : i64, scratch_operands = 1 : i64, tpu.core_type = #tpu.core_type<tc>, window_params = [{transform_indices = @transform_0, window_bounds = array<i64: 8, 32>}, {transform_indices = @transform_1, window_bounds = array<i64: 32, 128>}, {transform_indices = @transform_2, window_bounds = array<i64: 1, 128>}, {transform_indices = @transform_3, window_bounds = array<i64: 128, 384>}, {pipeline_mode = #tpu.pipeline_mode<synchronous>, transform_indices = @transform_4, window_bounds = array<i64: 1, 384>}, {pipeline_mode = #tpu.pipeline_mode<synchronous>, transform_indices = @transform_5, window_bounds = array<i64: 256, 128>}, {pipeline_mode = #tpu.pipeline_mode<synchronous>, transform_indices = @transform_6, window_bounds = array<i64: 1, 128>}, {transform_indices = @transform_7, window_bounds = array<i64: 8, 256>}]} {
    %c0_i32 = arith.constant 0 : i32
    %0 = arith.cmpi eq, %arg1, %c0_i32 : i32
    %1 = arith.extui %0 : i1 to i32
    %c0_i32_0 = arith.constant 0 : i32
    %2 = arith.cmpi ne, %1, %c0_i32_0 : i32
    scf.if %2 {
      %cst_15 = arith.constant 0.000000e+00 : f32
      %20 = vector.broadcast %cst_15 : f32 to vector<8x384xf32>
      %c0_16 = arith.constant 0 : index
      %c0_17 = arith.constant 0 : index
      %21 = vector.load %arg10[%c0_16, %c0_17] : memref<8x384xf32, #tpu.memory_space<vmem>>, vector<8x384xf32>
      tpu.vector_store %arg10[%c0_16, %c0_17], %20 {strides = array<i32>} : memref<8x384xf32, #tpu.memory_space<vmem>>, vector<8x384xf32>,
    } else {
    }
    %c0 = arith.constant 0 : index
    %c0_1 = arith.constant 0 : index
    %3 = vector.load %arg2[%c0, %c0_1] : memref<8x32xbf16, #tpu.memory_space<vmem>>, vector<8x32xbf16>
    %c0_2 = arith.constant 0 : index
    %c0_3 = arith.constant 0 : index
    %4 = vector.load %arg3[%c0_2, %c0_3] : memref<32x128xbf16, #tpu.memory_space<vmem>>, vector<32x128xbf16>
    %cst = arith.constant dense<0.000000e+00> : vector<8x128xf32>
    %5 = tpu.matmul %3, %4, %cst {dimension_numbers = #tpu.dot_dimension_numbers<[1], [0], [0], [1], [0, 0, 1, 1], [], []>} : vector<8x32xbf16>, vector<32x128xbf16>, vector<8x128xf32> -> vector<8x128xf32>
    %c0_4 = arith.constant 0 : index
    %c0_5 = arith.constant 0 : index
    %6 = vector.load %arg4[%c0_4, %c0_5] : memref<1x128xf32, #tpu.memory_space<vmem>>, vector<1x128xf32>
    %7 = vector.broadcast %6 : vector<1x128xf32> to vector<8x128xf32>
    %8 = arith.addf %5, %7 : vector<8x128xf32>
    %cst_6 = arith.constant 0.000000e+00 : f32
    %9 = vector.broadcast %cst_6 : f32 to vector<8x128xf32>
    %10 = arith.maximumf %8, %9 : vector<8x128xf32>
    %11 = arith.truncf %10 : vector<8x128xf32> to vector<8x128xbf16>
    %c0_7 = arith.constant 0 : index
    %c0_8 = arith.constant 0 : index
    %12 = vector.load %arg10[%c0_7, %c0_8] : memref<8x384xf32, #tpu.memory_space<vmem>>, vector<8x384xf32>
    %c0_9 = arith.constant 0 : index
    %c0_10 = arith.constant 0 : index
    %13 = vector.load %arg5[%c0_9, %c0_10] : memref<128x384xbf16, #tpu.memory_space<vmem>>, vector<128x384xbf16>
    %cst_11 = arith.constant dense<0.000000e+00> : vector<8x384xf32>
    %14 = tpu.matmul %11, %13, %cst_11 {dimension_numbers = #tpu.dot_dimension_numbers<[1], [0], [0], [1], [0, 0, 1, 1], [], []>} : vector<8x128xbf16>, vector<128x384xbf16>, vector<8x384xf32> -> vector<8x384xf32>
    %15 = arith.addf %12, %14 : vector<8x384xf32>
    %c0_12 = arith.constant 0 : index
    %c0_13 = arith.constant 0 : index
    %16 = vector.load %arg10[%c0_12, %c0_13] : memref<8x384xf32, #tpu.memory_space<vmem>>, vector<8x384xf32>
    tpu.vector_store %arg10[%c0_12, %c0_13], %15 {strides = array<i32>} : memref<8x384xf32, #tpu.memory_space<vmem>>, vector<8x384xf32>,
    %c2_i32 = arith.constant 2 : i32
    %17 = arith.cmpi eq, %arg1, %c2_i32 : i32
    %18 = arith.extui %17 : i1 to i32
    %c0_i32_14 = arith.constant 0 : i32
    %19 = arith.cmpi ne, %18, %c0_i32_14 : i32
    scf.if %19 {
      %c0_15 = arith.constant 0 : index
      %c0_16 = arith.constant 0 : index
      %20 = vector.load %arg10[%c0_15, %c0_16] : memref<8x384xf32, #tpu.memory_space<vmem>>, vector<8x384xf32>
      %c0_17 = arith.constant 0 : index
      %c0_18 = arith.constant 0 : index
      %21 = vector.load %arg6[%c0_17, %c0_18] : memref<1x384xf32, #tpu.memory_space<vmem>>, vector<1x384xf32>
      %22 = vector.broadcast %21 : vector<1x384xf32> to vector<8x384xf32>
      %23 = arith.addf %20, %22 : vector<8x384xf32>
      %24 = vector.extract_strided_slice %23 {offsets = [0, 0], sizes = [8, 256], strides = [1, 1]} : vector<8x384xf32> to vector<8x256xf32>
      %cst_19 = arith.constant 0.000000e+00 : f32
      %25 = vector.broadcast %cst_19 : f32 to vector<8x256xf32>
      %26 = arith.maximumf %24, %25 : vector<8x256xf32>
      %27 = vector.extract_strided_slice %23 {offsets = [0, 256], sizes = [8, 128], strides = [1, 1]} : vector<8x384xf32> to vector<8x128xf32>
      %28 = math.tanh %27 : vector<8x128xf32>
      %29 = arith.truncf %26 : vector<8x256xf32> to vector<8x256xbf16>
      %c0_20 = arith.constant 0 : index
      %c0_21 = arith.constant 0 : index
      %30 = vector.load %arg7[%c0_20, %c0_21] : memref<256x128xbf16, #tpu.memory_space<vmem>>, vector<256x128xbf16>
      %cst_22 = arith.constant dense<0.000000e+00> : vector<8x128xf32>
      %31 = tpu.matmul %29, %30, %cst_22 {dimension_numbers = #tpu.dot_dimension_numbers<[1], [0], [0], [1], [0, 0, 1, 1], [], []>} : vector<8x256xbf16>, vector<256x128xbf16>, vector<8x128xf32> -> vector<8x128xf32>
      %c0_23 = arith.constant 0 : index
      %c0_24 = arith.constant 0 : index
      %32 = vector.load %arg8[%c0_23, %c0_24] : memref<1x128xf32, #tpu.memory_space<vmem>>, vector<1x128xf32>
      %33 = vector.broadcast %32 : vector<1x128xf32> to vector<8x128xf32>
      %34 = arith.addf %31, %33 : vector<8x128xf32>
      %35 = math.tanh %34 : vector<8x128xf32>
      %36 = arith.mulf %28, %28 : vector<8x128xf32>
      %cst_25 = arith.constant dense<0.000000e+00> : vector<8xf32>
      %37 = vector.multi_reduction <add>, %36, %cst_25 [1] : vector<8x128xf32> to vector<8xf32>
      %38 = vector.shape_cast %37 : vector<8xf32> to vector<8x1xf32>
      %39 = arith.mulf %35, %35 : vector<8x128xf32>
      %cst_26 = arith.constant dense<0.000000e+00> : vector<8xf32>
      %40 = vector.multi_reduction <add>, %39, %cst_26 [1] : vector<8x128xf32> to vector<8xf32>
      %41 = vector.shape_cast %40 : vector<8xf32> to vector<8x1xf32>
      %cst_27 = arith.constant 1.000000e-24 : f32
      %42 = vector.broadcast %cst_27 : f32 to vector<8x1xf32>
      %43 = arith.maximumf %38, %42 : vector<8x1xf32>
      %44 = math.rsqrt %43 : vector<8x1xf32>
      %45 = vector.broadcast %44 : vector<8x1xf32> to vector<8x128xf32>
      %46 = arith.mulf %28, %45 : vector<8x128xf32>
      %cst_28 = arith.constant 1.000000e-24 : f32
      %47 = vector.broadcast %cst_28 : f32 to vector<8x1xf32>
      %48 = arith.maximumf %41, %47 : vector<8x1xf32>
      %49 = math.rsqrt %48 : vector<8x1xf32>
      %50 = vector.broadcast %49 : vector<8x1xf32> to vector<8x128xf32>
      %51 = arith.mulf %35, %50 : vector<8x128xf32>
      %c0_29 = arith.constant 0 : index
      %c0_30 = arith.constant 0 : index
      %52 = vector.load %arg9[%c0_29, %c0_30] : memref<8x256xf32, #tpu.memory_space<vmem>>, vector<8x128xf32>
      tpu.vector_store %arg9[%c0_29, %c0_30], %46 {strides = array<i32>} : memref<8x256xf32, #tpu.memory_space<vmem>>, vector<8x128xf32>,
      %c0_31 = arith.constant 0 : index
      %c128 = arith.constant 128 : index
      %53 = vector.load %arg9[%c0_31, %c128] : memref<8x256xf32, #tpu.memory_space<vmem>>, vector<8x128xf32>
      tpu.vector_store %arg9[%c0_31, %c128], %51 {strides = array<i32>} : memref<8x256xf32, #tpu.memory_space<vmem>>, vector<8x128xf32>,
    } else {
    }
    return
  }
  func.func @transform_0(%arg0: i32, %arg1: i32) -> (i32, i32) {
    %c0_i32 = arith.constant 0 : i32
    %c0_i32_0 = arith.constant 0 : i32
    return %arg0, %c0_i32 : i32, i32
  }
  func.func @transform_1(%arg0: i32, %arg1: i32) -> (i32, i32) {
    %c0_i32 = arith.constant 0 : i32
    %c0_i32_0 = arith.constant 0 : i32
    return %c0_i32, %arg1 : i32, i32
  }
  func.func @transform_2(%arg0: i32, %arg1: i32) -> (i32, i32) {
    %c0_i32 = arith.constant 0 : i32
    %c0_i32_0 = arith.constant 0 : i32
    return %c0_i32, %arg1 : i32, i32
  }
  func.func @transform_3(%arg0: i32, %arg1: i32) -> (i32, i32) {
    %c0_i32 = arith.constant 0 : i32
    %c0_i32_0 = arith.constant 0 : i32
    return %arg1, %c0_i32 : i32, i32
  }
  func.func @transform_4(%arg0: i32, %arg1: i32) -> (i32, i32) {
    %c0_i32 = arith.constant 0 : i32
    %c0_i32_0 = arith.constant 0 : i32
    %c0_i32_1 = arith.constant 0 : i32
    return %c0_i32, %c0_i32_0 : i32, i32
  }
  func.func @transform_5(%arg0: i32, %arg1: i32) -> (i32, i32) {
    %c0_i32 = arith.constant 0 : i32
    %c0_i32_0 = arith.constant 0 : i32
    %c0_i32_1 = arith.constant 0 : i32
    return %c0_i32, %c0_i32_0 : i32, i32
  }
  func.func @transform_6(%arg0: i32, %arg1: i32) -> (i32, i32) {
    %c0_i32 = arith.constant 0 : i32
    %c0_i32_0 = arith.constant 0 : i32
    %c0_i32_1 = arith.constant 0 : i32
    return %c0_i32, %c0_i32_0 : i32, i32
  }
  func.func @transform_7(%arg0: i32, %arg1: i32) -> (i32, i32) {
    %c0_i32 = arith.constant 0 : i32
    %c0_i32_0 = arith.constant 0 : i32
    return %arg0, %c0_i32 : i32, i32
  }
}

</mosaic_0001>

<llo_original>
// kernel: tpu_custom_call.1
$region0: #{tpu_custom_call.1}
  #allocation0 [shape = 'u32[]', space=smem, size = 0x4, offset = 0x4, fixed_abs, tag = 'smem constant byte address 0x4 - core index']
  #allocation1 [shape = 'u32[144,128]{1,0:T(1,128)}', space=vmem, size = 0x12000, scoped, tag = 'internal scratch']
  #allocation2 [shape = 'f32[8,384]{1,0:T(8,128)}', space=vmem, size = 0x3000, scoped, tag = 'scratch operand']
  %s0 = inlined_call_operand.hbm [shape: bf16[16,32], index: 0, kind: input, shape index: {}]
  %s1 = inlined_call_operand.hbm [shape: bf16[32,384], index: 1, kind: input, shape index: {}]
  %s2 = inlined_call_operand.vmem [shape: f32[1,384], index: 2, kind: input, shape index: {}]
  %s3 = inlined_call_operand.hbm [shape: bf16[384,384], index: 3, kind: input, shape index: {}]
  %s4 = inlined_call_operand.vmem [shape: f32[1,384], index: 4, kind: input, shape index: {}]
  %s5 = inlined_call_operand.hbm [shape: bf16[256,128], index: 5, kind: input, shape index: {}]
  %s6 = inlined_call_operand.vmem [shape: f32[1,128], index: 6, kind: input, shape index: {}]
  %s7 = inlined_call_operand.hbm [shape: f32[16,256], index: 7, kind: output, shape index: {}]
  %s8 = sld [smem:[#allocation0]]
  $region85: #{tpu_custom_call.1} parent=0
    _
  %s10 = ssub.s32 1, %s8
  %s11 = scalar_select 0, %s10, %s8
  $region1: #{tpu_custom_call.1} parent=0
    #allocation3 [shape = 'u8[4096]{0}', space=vmem, size = 0x1000, scoped, tag = 'input window, operand 0']
    #allocation4 [shape = 's32[2]{0}', space=sflag, size = 0x8, scoped, tag = 'scoped memory for tpu_custom_call.1']
    #allocation5 [shape = 's32[2]{0}', space=sflag, size = 0x8, scoped, tag = 'scoped memory for tpu_custom_call.1']
    #allocation6 [shape = 'u8[16384]{0}', space=vmem, size = 0x4000, scoped, tag = 'input window, operand 1']
    #allocation7 [shape = 's32[2]{0}', space=sflag, size = 0x8, scoped, tag = 'scoped memory for tpu_custom_call.1']
    #allocation8 [shape = 'u8[196608]{0}', space=vmem, size = 0x30000, scoped, tag = 'input window, operand 3']
    #allocation9 [shape = 'u8[65536]{0}', space=vmem, size = 0x10000, scoped, tag = 'input window, operand 5, single buffered']
    #allocation10 [shape = 's32[1]{0}', space=sflag, size = 0x4, scoped, tag = 'scoped memory for tpu_custom_call.1']
    #allocation11 [shape = 'u8[16384]{0}', space=vmem, size = 0x4000, scoped, tag = 'output window, operand 0']
    %12 = vsyncpa [#allocation4], 0
    %s13 = scalar_lea.sflag [#allocation4], 1
    %14 = vsyncpa %s13, 0
    %15 = vsyncpa [#allocation7], 0
    %s16 = scalar_lea.sflag [#allocation7], 1
    %17 = vsyncpa %s16, 0
    %18 = vsyncpa [#allocation10], 0
    %19 = vsyncpa [#allocation5], 0
    %s20 = scalar_lea.sflag [#allocation5], 1
    %21 = vsyncpa %s20, 0
    loop: start=0, step=1, limit=8
    $region2: #{tpu_custom_call.1} parent=1 // loop_pre_header
      _
    $region3: #{tpu_custom_call.1} parent=1 // loop_header
      %s23 = sphi 0, %s27
      %p24 = scmp.ge.s32.totalorder %s23, 8
      %s30 = sphi 0, %s42
      %s31 = sphi 0, %s38
      %s32 = sphi 0, %s30
      %s33 = sphi 0, %s31
      %s34 = sphi 0, %s32
      %s35 = sphi 0, %s33
      %s45 = sphi 0, %s47
      %s48 = sphi 0, %s45
      %s49 = sphi 0, %s48
      %s65 = sphi 0, %s49
      %s71 = sphi 0, %s73
      %s74 = sphi 0, %s71
      %s75 = sphi 0, %s74
      %s91 = sphi 0, %s75
      %s97 = sphi 0, %s99
      %s100 = sphi 0, %s97
      %s101 = sphi 0, %s100
      %s117 = sphi 0, %s101
      %s123 = sphi 0, %s125
      %s126 = sphi 0, %s123
      %s127 = sphi 0, %s126
      %s143 = sphi 0, %s127
      %s147 = sphi 0, %s147
      %s149 = sphi 0, %s147
      %s150 = sphi 0, %s149
      %s164 = sphi 0, %s150
      %s168 = sphi 0, %s168
      %s170 = sphi 0, %s168
      %s171 = sphi 0, %s170
      %s185 = sphi 0, %s171
      %s189 = sphi 0, %s189
      %s191 = sphi 0, %s189
      %s192 = sphi 0, %s191
      %s206 = sphi 0, %s192
      %s212 = sphi 0, %s214
      %s215 = sphi 0, %s212
      %s216 = sphi 0, %s215
      %s232 = sphi 0, %s216
    $region4: #{tpu_custom_call.1} parent=1 // loop_header_branch
      %26 = sbr.rel (%p24) target = $region8
    $region5: #{tpu_custom_call.1} parent=1 // loop_body
      %s28 = ssub.s32 %s23, 1
      %s29 = ssub.s32 %s23, 2
      %s36 = sadd.s32 1, %s31
      %p37 = scmp.ge.s32.totalorder %s36, 3
      %s38 = scalar_select %p37, 0, %s36
      %s39 = sadd.s32 1, %s30
      %s40 = scalar_select %p37, %s39, %s30
      %p41 = scmp.ge.s32.totalorder %s40, 2
      %s42 = scalar_select %p41, 0, %s40
      %s43 = ssub.s32 %s30, %s42
      %p44 = scmp.eq.s32.totalorder %s43, 0
      %s46 = sadd.s32 %s45, 1
      %s47 = scalar_select %p44, %s45, %s46
      %p50 = pneg %p44
      %p51 = scmp.eq.s32.totalorder %s23, 5
      %p52 = por %p50, %p51
      %p53 = scmp.ne.s32.totalorder %s45, %s48
      %p54 = scmp.eq.s32.totalorder %s23, 0
      %p55 = por %p53, %p54
      %p56 = scmp.ne.s32.totalorder %s45, %s48
      %p57 = scmp.eq.s32.totalorder %s28, 5
      %p58 = por %p56, %p57
      %p59 = scmp.ne.s32.totalorder %s48, %s49
      %p60 = scmp.eq.s32.totalorder %s28, 0
      %p61 = por %p59, %p60
      %p62 = scmp.ne.s32.totalorder %s48, %s49
      %p63 = scmp.eq.s32.totalorder %s29, 5
      %p64 = por %p62, %p63
      %p66 = scmp.ne.s32.totalorder %s49, %s65
      %p67 = scmp.eq.s32.totalorder %s29, 0
      %p68 = por %p66, %p67
      %s69 = ssub.s32 %s31, %s38
      %p70 = scmp.eq.s32.totalorder %s69, 0
      %s72 = sadd.s32 %s71, 1
      %s73 = scalar_select %p70, %s71, %s72
      %p76 = pneg %p70
      %p77 = scmp.eq.s32.totalorder %s23, 5
      %p78 = por %p76, %p77
      %p79 = scmp.ne.s32.totalorder %s71, %s74
      %p80 = scmp.eq.s32.totalorder %s23, 0
      %p81 = por %p79, %p80
      %p82 = scmp.ne.s32.totalorder %s71, %s74
      %p83 = scmp.eq.s32.totalorder %s28, 5
      %p84 = por %p82, %p83
      %p85 = scmp.ne.s32.totalorder %s74, %s75
      %p86 = scmp.eq.s32.totalorder %s28, 0
      %p87 = por %p85, %p86
      %p88 = scmp.ne.s32.totalorder %s74, %s75
      %p89 = scmp.eq.s32.totalorder %s29, 5
      %p90 = por %p88, %p89
      %p92 = scmp.ne.s32.totalorder %s75, %s91
      %p93 = scmp.eq.s32.totalorder %s29, 0
      %p94 = por %p92, %p93
      %s95 = ssub.s32 %s31, %s38
      %p96 = scmp.eq.s32.totalorder %s95, 0
      %s98 = sadd.s32 %s97, 1
      %s99 = scalar_select %p96, %s97, %s98
      %p102 = pneg %p96
      %p103 = scmp.eq.s32.totalorder %s23, 5
      %p104 = por %p102, %p103
      %p105 = scmp.ne.s32.totalorder %s97, %s100
      %p106 = scmp.eq.s32.totalorder %s23, 0
      %p107 = por %p105, %p106
      %p108 = scmp.ne.s32.totalorder %s97, %s100
      %p109 = scmp.eq.s32.totalorder %s28, 5
      %p110 = por %p108, %p109
      %p111 = scmp.ne.s32.totalorder %s100, %s101
      %p112 = scmp.eq.s32.totalorder %s28, 0
      %p113 = por %p111, %p112
      %p114 = scmp.ne.s32.totalorder %s100, %s101
      %p115 = scmp.eq.s32.totalorder %s29, 5
      %p116 = por %p114, %p115
      %p118 = scmp.ne.s32.totalorder %s101, %s117
      %p119 = scmp.eq.s32.totalorder %s29, 0
      %p120 = por %p118, %p119
      %s121 = ssub.s32 %s31, %s38
      %p122 = scmp.eq.s32.totalorder %s121, 0
      %s124 = sadd.s32 %s123, 1
      %s125 = scalar_select %p122, %s123, %s124
      %p128 = pneg %p122
      %p129 = scmp.eq.s32.totalorder %s23, 5
      %p130 = por %p128, %p129
      %p131 = scmp.ne.s32.totalorder %s123, %s126
      %p132 = scmp.eq.s32.totalorder %s23, 0
      %p133 = por %p131, %p132
      %p134 = scmp.ne.s32.totalorder %s123, %s126
      %p135 = scmp.eq.s32.totalorder %s28, 5
      %p136 = por %p134, %p135
      %p137 = scmp.ne.s32.totalorder %s126, %s127
      %p138 = scmp.eq.s32.totalorder %s28, 0
      %p139 = por %p137, %p138
      %p140 = scmp.ne.s32.totalorder %s126, %s127
      %p141 = scmp.eq.s32.totalorder %s29, 5
      %p142 = por %p140, %p141
      %p144 = scmp.ne.s32.totalorder %s127, %s143
      %p145 = scmp.eq.s32.totalorder %s29, 0
      %p146 = por %p144, %p145
      %s148 = sadd.s32 %s147, 1
      %p151 = scmp.eq.s32.totalorder %s23, 5
      %p152 = scmp.ne.s32.totalorder %s147, %s149
      %p153 = scmp.eq.s32.totalorder %s23, 0
      %p154 = por %p152, %p153
      %p155 = scmp.ne.s32.totalorder %s147, %s149
      %p156 = scmp.eq.s32.totalorder %s28, 5
      %p157 = por %p155, %p156
      %p158 = scmp.ne.s32.totalorder %s149, %s150
      %p159 = scmp.eq.s32.totalorder %s28, 0
      %p160 = por %p158, %p159
      %p161 = scmp.ne.s32.totalorder %s149, %s150
      %p162 = scmp.eq.s32.totalorder %s29, 5
      %p163 = por %p161, %p162
      %p165 = scmp.ne.s32.totalorder %s150, %s164
      %p166 = scmp.eq.s32.totalorder %s29, 0
      %p167 = por %p165, %p166
      %s169 = sadd.s32 %s168, 1
      %p172 = scmp.eq.s32.totalorder %s23, 5
      %p173 = scmp.ne.s32.totalorder %s168, %s170
      %p174 = scmp.eq.s32.totalorder %s23, 0
      %p175 = por %p173, %p174
      %p176 = scmp.ne.s32.totalorder %s168, %s170
      %p177 = scmp.eq.s32.totalorder %s28, 5
      %p178 = por %p176, %p177
      %p179 = scmp.ne.s32.totalorder %s170, %s171
      %p180 = scmp.eq.s32.totalorder %s28, 0
      %p181 = por %p179, %p180
      %p182 = scmp.ne.s32.totalorder %s170, %s171
      %p183 = scmp.eq.s32.totalorder %s29, 5
      %p184 = por %p182, %p183
      %p186 = scmp.ne.s32.totalorder %s171, %s185
      %p187 = scmp.eq.s32.totalorder %s29, 0
      %p188 = por %p186, %p187
      %s190 = sadd.s32 %s189, 1
      %p193 = scmp.eq.s32.totalorder %s23, 5
      %p194 = scmp.ne.s32.totalorder %s189, %s191
      %p195 = scmp.eq.s32.totalorder %s23, 0
      %p196 = por %p194, %p195
      %p197 = scmp.ne.s32.totalorder %s189, %s191
      %p198 = scmp.eq.s32.totalorder %s28, 5
      %p199 = por %p197, %p198
      %p200 = scmp.ne.s32.totalorder %s191, %s192
      %p201 = scmp.eq.s32.totalorder %s28, 0
      %p202 = por %p200, %p201
      %p203 = scmp.ne.s32.totalorder %s191, %s192
      %p204 = scmp.eq.s32.totalorder %s29, 5
      %p205 = por %p203, %p204
      %p207 = scmp.ne.s32.totalorder %s192, %s206
      %p208 = scmp.eq.s32.totalorder %s29, 0
      %p209 = por %p207, %p208
      %s210 = ssub.s32 %s30, %s42
      %p211 = scmp.eq.s32.totalorder %s210, 0
      %s213 = sadd.s32 %s212, 1
      %s214 = scalar_select %p211, %s212, %s213
      %p217 = pneg %p211
      %p218 = scmp.eq.s32.totalorder %s23, 5
      %p219 = por %p217, %p218
      %p220 = scmp.ne.s32.totalorder %s212, %s215
      %p221 = scmp.eq.s32.totalorder %s23, 0
      %p222 = por %p220, %p221
      %p223 = scmp.ne.s32.totalorder %s212, %s215
      %p224 = scmp.eq.s32.totalorder %s28, 5
      %p225 = por %p223, %p224
      %p226 = scmp.ne.s32.totalorder %s215, %s216
      %p227 = scmp.eq.s32.totalorder %s28, 0
      %p228 = por %p226, %p227
      %p229 = scmp.ne.s32.totalorder %s215, %s216
      %p230 = scmp.eq.s32.totalorder %s29, 5
      %p231 = por %p229, %p230
      %p233 = scmp.ne.s32.totalorder %s216, %s232
      %p234 = scmp.eq.s32.totalorder %s29, 0
      %p235 = por %p233, %p234
      %p236 = scmp.le.s32.totalorder 1, %s23
      %p237 = scmp.lt.s32.totalorder %s23, 7
      %p238 = pnand %p236, %p237
      %p239 = pneg %p238
      // Predicated region
      $region9: #{tpu_custom_call.1} parent=5 // pred_check
        _
      $region10: #{tpu_custom_call.1} parent=5 // pred_check_branch
        %241 = sbr.rel (%p238) target = $region12
      $region11: #{tpu_custom_call.1} parent=5 // pred_region
        %s242 = ssub.s32 %s23, 1
        // Predicated region
        $region13: #{tpu_custom_call.1} parent=11 // pred_check
          %p243 = pneg %p160
        $region14: #{tpu_custom_call.1} parent=11 // pred_check_branch
          %245 = sbr.rel (%p243) target = $region16
        $region15: #{tpu_custom_call.1} parent=11 // pred_region
          _
        $region16: #{tpu_custom_call.1} parent=11 // pred_fallthru
          _
        // Predicated region
        $region17: #{tpu_custom_call.1} parent=11 // pred_check
          %p246 = pneg %p181
        $region18: #{tpu_custom_call.1} parent=11 // pred_check_branch
          %248 = sbr.rel (%p246) target = $region20
        $region19: #{tpu_custom_call.1} parent=11 // pred_region
          %s250 = ssub.s32 2048, 2048
          %251 = vsyncadd [#allocation10], %s250
          %s252 = sshll.u32 [#allocation9], 4
          %s253 = int_to_ptr.vmem [resolvable:$true] %s252
          %258 = dma.hbm_to_vmem [thread:$0]  %s5, 2048, %s253, [#allocation10], 64, 64, 4
        $region20: #{tpu_custom_call.1} parent=11 // pred_fallthru
          _
        // Predicated region
        $region21: #{tpu_custom_call.1} parent=11 // pred_check
          %p259 = pneg %p202
        $region22: #{tpu_custom_call.1} parent=11 // pred_check_branch
          %261 = sbr.rel (%p259) target = $region24
        $region23: #{tpu_custom_call.1} parent=11 // pred_region
          _
        $region24: #{tpu_custom_call.1} parent=11 // pred_fallthru
          _
      $region12: #{tpu_custom_call.1} parent=5 // pred_fallthru
        _
      %p262 = scmp.lt.s32.totalorder %s23, 6
      // Predicated region
      $region25: #{tpu_custom_call.1} parent=5 // pred_check
        %p263 = pneg %p262
      $region26: #{tpu_custom_call.1} parent=5 // pred_check_branch
        %265 = sbr.rel (%p263) target = $region28
      $region27: #{tpu_custom_call.1} parent=5 // pred_region
        // Predicated region
        $region29: #{tpu_custom_call.1} parent=27 // pred_check
          %p266 = pneg %p55
        $region30: #{tpu_custom_call.1} parent=27 // pred_check_branch
          %268 = sbr.rel (%p266) target = $region32
        $region31: #{tpu_custom_call.1} parent=27 // pred_region
          %s269 = sand.u32 %s45, 1
          %s270 = scalar_lea.sflag [#allocation4], %s269
          %s271 = sand.u32 %s45, 1
          %s272 = smul.addr %s271, 4
          %s273 = scalar_lea.vmem [#allocation3], %s272
          %s275 = ssub.s32 64, 64
          %276 = vsyncadd %s270, %s275
          %s277 = smul.addr %s30, 64
          %s278 = scalar_lea.hbm %s0, %s277
          %s280 = sshll.u32 %s273, 4
          %s281 = int_to_ptr.vmem [resolvable:$true] %s280
          %283 = dma.hbm_to_vmem [thread:$0]  %s278, 64, %s281, %s270
        $region32: #{tpu_custom_call.1} parent=27 // pred_fallthru
          _
        // Predicated region
        $region33: #{tpu_custom_call.1} parent=27 // pred_check
          %p284 = pneg %p81
        $region34: #{tpu_custom_call.1} parent=27 // pred_check_branch
          %286 = sbr.rel (%p284) target = $region36
        $region35: #{tpu_custom_call.1} parent=27 // pred_region
          %s287 = sand.u32 %s23, 1
          %s288 = scalar_lea.sflag [#allocation7], %s287
          %s289 = sand.u32 %s71, 1
          %s290 = smul.addr %s289, 16
          %s291 = scalar_lea.vmem [#allocation6], %s290
          %s293 = ssub.s32 256, 256
          %294 = vsyncadd %s288, %s293
          %s295 = smul.addr %s31, 64
          %s296 = scalar_lea.hbm %s1, %s295
          %s297 = sshll.u32 %s291, 4
          %s298 = int_to_ptr.vmem [resolvable:$true] %s297
          %303 = dma.hbm_to_vmem [thread:$0]  %s296, 256, %s298, %s288, 192, 64, 4
        $region36: #{tpu_custom_call.1} parent=27 // pred_fallthru
          _
        // Predicated region
        $region37: #{tpu_custom_call.1} parent=27 // pred_check
          %p304 = pneg %p107
        $region38: #{tpu_custom_call.1} parent=27 // pred_check_branch
          %306 = sbr.rel (%p304) target = $region40
        $region39: #{tpu_custom_call.1} parent=27 // pred_region
          %p307 = scmp.lt.s32.totalorder %s31, 2
          %s308 = scalar_select %p307, %s31, 2
          %s309 = scalar_lea.vmem %s2, %s308
        $region40: #{tpu_custom_call.1} parent=27 // pred_fallthru
          _
        // Predicated region
        $region41: #{tpu_custom_call.1} parent=27 // pred_check
          %p310 = pneg %p133
        $region42: #{tpu_custom_call.1} parent=27 // pred_check_branch
          %312 = sbr.rel (%p310) target = $region44
        $region43: #{tpu_custom_call.1} parent=27 // pred_region
          %s313 = sand.u32 %s23, 1
          %s314 = scalar_lea.sflag [#allocation7], %s313
          %s315 = sand.u32 %s123, 1
          %s316 = smul.addr %s315, 192
          %s317 = scalar_lea.vmem [#allocation8], %s316
          %s318 = smul.u32 16, %s31
          %s320 = ssub.s32 3072, 3072
          %321 = vsyncadd %s314, %s320
          %s322 = smul.addr %s318, 3
          %s323 = smul.addr %s322, 64
          %s324 = scalar_lea.hbm %s3, %s323
          %s325 = sshll.u32 %s317, 4
          %s326 = int_to_ptr.vmem [resolvable:$true] %s325
          %331 = dma.hbm_to_vmem [thread:$0]  %s324, 3072, %s326, %s314, 192, 192, 12
        $region44: #{tpu_custom_call.1} parent=27 // pred_fallthru
          _
      $region28: #{tpu_custom_call.1} parent=5 // pred_fallthru
        _
      %p332 = scmp.le.s32.totalorder 1, %s23
      %p333 = scmp.lt.s32.totalorder %s23, 7
      %p334 = pnand %p332, %p333
      %p335 = pneg %p334
      // Predicated region
      $region45: #{tpu_custom_call.1} parent=5 // pred_check
        _
      $region46: #{tpu_custom_call.1} parent=5 // pred_check_branch
        %337 = sbr.rel (%p334) target = $region48
      $region47: #{tpu_custom_call.1} parent=5 // pred_region
        %s338 = ssub.s32 %s23, 1
        %s339 = sand.u32 %s48, 1
        %s340 = scalar_lea.sflag [#allocation4], %s339
        %s341 = sand.u32 %s48, 1
        %s342 = smul.addr %s341, 4
        %s343 = scalar_lea.vmem [#allocation3], %s342
        // Predicated region
        $region49: #{tpu_custom_call.1} parent=47 // pred_check
          %p344 = pneg %p61
        $region50: #{tpu_custom_call.1} parent=47 // pred_check_branch
          %346 = sbr.rel (%p344) target = $region52
        $region51: #{tpu_custom_call.1} parent=47 // pred_region
          %347 = dma.done %s340, 64
        $region52: #{tpu_custom_call.1} parent=47 // pred_fallthru
          _
        %s348 = sand.u32 %s28, 1
        %s349 = scalar_lea.sflag [#allocation7], %s348
        %s350 = sand.u32 %s74, 1
        %s351 = smul.addr %s350, 16
        %s352 = scalar_lea.vmem [#allocation6], %s351
        // Predicated region
        $region53: #{tpu_custom_call.1} parent=47 // pred_check
          %p353 = pneg %p87
        $region54: #{tpu_custom_call.1} parent=47 // pred_check_branch
          %355 = sbr.rel (%p353) target = $region56
        $region55: #{tpu_custom_call.1} parent=47 // pred_region
          %356 = dma.done %s349, 256
        $region56: #{tpu_custom_call.1} parent=47 // pred_fallthru
          _
        %s357 = sand.u32 %s28, 1
        %s358 = scalar_lea.sflag [#allocation7], %s357
        %s359 = sand.u32 %s126, 1
        %s360 = smul.addr %s359, 192
        %s361 = scalar_lea.vmem [#allocation8], %s360
        // Predicated region
        $region57: #{tpu_custom_call.1} parent=47 // pred_check
          %p362 = pneg %p139
        $region58: #{tpu_custom_call.1} parent=47 // pred_check_branch
          %364 = sbr.rel (%p362) target = $region60
        $region59: #{tpu_custom_call.1} parent=47 // pred_region
          %365 = dma.done %s358, 3072
        $region60: #{tpu_custom_call.1} parent=47 // pred_fallthru
          _
        // Predicated region
        $region61: #{tpu_custom_call.1} parent=47 // pred_check
          %p366 = pneg %p181
        $region62: #{tpu_custom_call.1} parent=47 // pred_check_branch
          %368 = sbr.rel (%p366) target = $region64
        $region63: #{tpu_custom_call.1} parent=47 // pred_region
          %369 = dma.done [#allocation10], 2048
        $region64: #{tpu_custom_call.1} parent=47 // pred_fallthru
          _
        %s370 = sand.u32 %s48, 1
        %s371 = scalar_lea.sflag [#allocation4], %s370
        %s372 = sand.u32 %s48, 1
        %s373 = smul.addr %s372, 4
        %s374 = scalar_lea.vmem [#allocation3], %s373
        %p375 = pneg %p61
        %p376 = pneg %p58
        %s377 = sand.u32 %s28, 1
        %s378 = scalar_lea.sflag [#allocation7], %s377
        %s379 = sand.u32 %s74, 1
        %s380 = smul.addr %s379, 16
        %s381 = scalar_lea.vmem [#allocation6], %s380
        %p382 = pneg %p87
        %p383 = pneg %p84
        %p384 = scmp.lt.s32.totalorder %s33, 2
        %s385 = scalar_select %p384, %s33, 2
        %s386 = scalar_lea.vmem %s2, %s385
        %p387 = pneg %p113
        %p388 = pneg %p110
        %s389 = sand.u32 %s28, 1
        %s390 = scalar_lea.sflag [#allocation7], %s389
        %s391 = sand.u32 %s126, 1
        %s392 = smul.addr %s391, 192
        %s393 = scalar_lea.vmem [#allocation8], %s392
        %p394 = pneg %p139
        %p395 = pneg %p136
        %p396 = pneg %p160
        %p397 = pneg %p157
        %p398 = pneg %p181
        %p399 = pneg %p178
        %p400 = pneg %p202
        %p401 = pneg %p199
        %p402 = pneg %p228
        %p403 = pneg %p225
        %s404 = sand.u32 %s215, 1
        %s405 = scalar_lea.sflag [#allocation5], %s404
        %s406 = sand.u32 %s215, 1
        %s407 = smul.addr %s406, 16
        %s408 = scalar_lea.vmem [#allocation11], %s407
        %p409 = scmp.lt.s32.totalorder %s33, 2
        %s410 = scalar_select %p409, %s33, 2
        %s411 = scalar_lea.vmem %s2, %s410
        %s412 = smul.u32 16, %s33
        %p414 = scmp.eq.s32.totalorder %s33, 0
        // Predicated region
        $region65: #{tpu_custom_call.1} parent=47 // pred_check
          %p415 = pneg %p414
        $region66: #{tpu_custom_call.1} parent=47 // pred_check_branch
          %417 = sbr.rel (%p415) target = $region68
        $region67: #{tpu_custom_call.1} parent=47 // pred_region
          %418 = vst [vmem:[#allocation2] sm:$0xff] 0.0
          %419 = vst [vmem:[#allocation2 + $0x8] sm:$0xff] 0.0
          %420 = vst [vmem:[#allocation2 + $0x10] sm:$0xff] 0.0
        $region68: #{tpu_custom_call.1} parent=47 // pred_fallthru
          _
        %v421 = vld [vmem:[%s343] sm:$0xf]
        %v422 = vld [vmem:[%s352] sm:$0xf]
        %v423 = vld [vmem:[%s352 + $0x4] sm:$0xf]
        %v424 = vld [vmem:[%s352 + $0x8] sm:$0xf]
        %v425 = vld [vmem:[%s352 + $0xc] sm:$0xf]
        %v426 = vld [vmem:[%s411] sm:$0x1]
        %v428 = vlaneseq
        %v429 = vshrl.u32 %v428, 7
        %v430 = vsub.s32 0, %v429
        %v431 = vrot.slane %v426, %v430
        %v437 = vunpack.c.l.b16 %v422
        %v438 = vunpack.c.l.b16 %v423
        %v439 = vunpack.c.l.b16 %v424
        %v440 = vunpack.c.l.b16 %v425
        %v441 = vpack.c.b16 %v438, %v437
        %v442 = vpack.c.b16 %v440, %v439
        %vm445 = vcmask 261120
        %v447 = vsel %vm445, %v421, 0
        %449 = vmatprep.subr.bf16.mxu0 0
        %450 = vmatpush1.bf16.msra.mxu0 %v441
        %451 = vmatprep.subr.bf16.mxu0 0
        %452 = vmatpush1.bf16.msra.mxu0 %v442
        %453 = vmatprep.subr.bf16.mxu0 0
        %454 = vmatpush1.bf16.msra.mxu0 0
        %455 = vmatprep.subr.bf16.mxu0 0
        %456 = vmatpush1.bf16.msra.mxu0 0
        %457 = vmatprep.subr.bf16.mxu0 0
        %458 = vmatpush1.bf16.msra.mxu0 0
        %459 = vmatprep.subr.bf16.mxu0 0
        %460 = vmatpush1.bf16.msra.mxu0 0
        %461 = vmatprep.subr.bf16.mxu0 0
        %462 = vmatpush1.bf16.msra.mxu0 0
        %463 = vmatprep.subr.bf16.mxu0 0
        %464 = vmatpush1.bf16.msra.mxu0 0
        %465 = vmatprep.subr.bf16.mxu0 0
        %466 = vmatpush1.bf16.msra.mxu0 0
        %467 = vmatprep.subr.bf16.mxu0 0
        %468 = vmatpush1.bf16.msra.mxu0 0
        %469 = vmatprep.subr.bf16.mxu0 0
        %470 = vmatpush1.bf16.msra.mxu0 0
        %471 = vmatprep.subr.bf16.mxu0 0
        %472 = vmatpush1.bf16.msra.mxu0 0
        %473 = vmatprep.subr.bf16.mxu0 0
        %474 = vmatpush1.bf16.msra.mxu0 0
        %475 = vmatprep.subr.bf16.mxu0 0
        %476 = vmatpush1.bf16.msra.mxu0 0
        %477 = vmatprep.subr.bf16.mxu0 0
        %478 = vmatpush1.bf16.msra.mxu0 0
        %479 = vmatprep.subr.bf16.mxu0 0
        %480 = vmatpush1.bf16.msra.mxu0 0
        %481 = vmatprep.mubr.bf16.mxu0 0
        %482 = vmatmul.mubr.bf16.gmra.mrb[0].mxu0 %v447
        %v483 = vpop.f32.mrb[0].mxu0
        %v484 = vadd.f32 %v431, %v483
        %v485 = vpop.f32.mrb[0].mxu0
        %v486 = vpop.f32.mrb[0].mxu0
        %v487 = vpop.f32.mrb[0].mxu0
        %488 = vdwg.mxu0
        %v489 = vmax.f32 %v484, 0.0
        %v490 = vpack.c.bf16 %v489, %v489
        %v491 = vld [vmem:[#allocation2] sm:$0xff]
        %v492 = vld [vmem:[#allocation2 + $0x8] sm:$0xff]
        %v493 = vld [vmem:[#allocation2 + $0x10] sm:$0xff]
        %v494 = vld [vmem:[%s361] sm:$0xff]
        %v495 = vld [vmem:[%s361 + $0x8] sm:$0xf]
        %v496 = vld [vmem:[%s361 + $0xc] sm:$0xff]
        %v497 = vld [vmem:[%s361 + $0x14] sm:$0xf]
        %v498 = vld [vmem:[%s361 + $0x18] sm:$0xff]
        %v499 = vld [vmem:[%s361 + $0x20] sm:$0xf]
        %v500 = vld [vmem:[%s361 + $0x24] sm:$0xff]
        %v501 = vld [vmem:[%s361 + $0x2c] sm:$0xf]
        %v502 = vld [vmem:[%s361 + $0x30] sm:$0xff]
        %v503 = vld [vmem:[%s361 + $0x38] sm:$0xf]
        %v504 = vld [vmem:[%s361 + $0x3c] sm:$0xff]
        %v505 = vld [vmem:[%s361 + $0x44] sm:$0xf]
        %v506 = vld [vmem:[%s361 + $0x48] sm:$0xff]
        %v507 = vld [vmem:[%s361 + $0x50] sm:$0xf]
        %v508 = vld [vmem:[%s361 + $0x54] sm:$0xff]
        %v509 = vld [vmem:[%s361 + $0x5c] sm:$0xf]
        %v510 = vld [vmem:[%s361 + $0x60] sm:$0xff]
        %v511 = vld [vmem:[%s361 + $0x68] sm:$0xf]
        %v512 = vld [vmem:[%s361 + $0x6c] sm:$0xff]
        %v513 = vld [vmem:[%s361 + $0x74] sm:$0xf]
        %v514 = vld [vmem:[%s361 + $0x78] sm:$0xff]
        %v515 = vld [vmem:[%s361 + $0x80] sm:$0xf]
        %v516 = vld [vmem:[%s361 + $0x84] sm:$0xff]
        %v517 = vld [vmem:[%s361 + $0x8c] sm:$0xf]
        %v518 = vld [vmem:[%s361 + $0x90] sm:$0xff]
        %v519 = vld [vmem:[%s361 + $0x98] sm:$0xf]
        %v520 = vld [vmem:[%s361 + $0x9c] sm:$0xff]
        %v521 = vld [vmem:[%s361 + $0xa4] sm:$0xf]
        %v522 = vld [vmem:[%s361 + $0xa8] sm:$0xff]
        %v523 = vld [vmem:[%s361 + $0xb0] sm:$0xf]
        %v524 = vld [vmem:[%s361 + $0xb4] sm:$0xff]
        %v525 = vld [vmem:[%s361 + $0xbc] sm:$0xf]
        %v558 = vunpack.c.l.b16 %v494
        %v559 = vunpack.c.h.b16 %v494
        %v560 = vunpack.c.l.b16 %v495
        %v561 = vunpack.c.l.b16 %v496
        %v562 = vunpack.c.h.b16 %v496
        %v563 = vunpack.c.l.b16 %v497
        %v564 = vunpack.c.l.b16 %v498
        %v565 = vunpack.c.h.b16 %v498
        %v566 = vunpack.c.l.b16 %v499
        %v567 = vunpack.c.l.b16 %v500
        %v568 = vunpack.c.h.b16 %v500
        %v569 = vunpack.c.l.b16 %v501
        %v570 = vunpack.c.l.b16 %v502
        %v571 = vunpack.c.h.b16 %v502
        %v572 = vunpack.c.l.b16 %v503
        %v573 = vunpack.c.l.b16 %v504
        %v574 = vunpack.c.h.b16 %v504
        %v575 = vunpack.c.l.b16 %v505
        %v576 = vunpack.c.l.b16 %v506
        %v577 = vunpack.c.h.b16 %v506
        %v578 = vunpack.c.l.b16 %v507
        %v579 = vunpack.c.l.b16 %v508
        %v580 = vunpack.c.h.b16 %v508
        %v581 = vunpack.c.l.b16 %v509
        %v582 = vunpack.c.l.b16 %v510
        %v583 = vunpack.c.h.b16 %v510
        %v584 = vunpack.c.l.b16 %v511
        %v585 = vunpack.c.l.b16 %v512
        %v586 = vunpack.c.h.b16 %v512
        %v587 = vunpack.c.l.b16 %v513
        %v588 = vunpack.c.l.b16 %v514
        %v589 = vunpack.c.h.b16 %v514
        %v590 = vunpack.c.l.b16 %v515
        %v591 = vunpack.c.l.b16 %v516
        %v592 = vunpack.c.h.b16 %v516
        %v593 = vunpack.c.l.b16 %v517
        %v594 = vunpack.c.l.b16 %v518
        %v595 = vunpack.c.h.b16 %v518
        %v596 = vunpack.c.l.b16 %v519
        %v597 = vunpack.c.l.b16 %v520
        %v598 = vunpack.c.h.b16 %v520
        %v599 = vunpack.c.l.b16 %v521
        %v600 = vunpack.c.l.b16 %v522
        %v601 = vunpack.c.h.b16 %v522
        %v602 = vunpack.c.l.b16 %v523
        %v603 = vunpack.c.l.b16 %v524
        %v604 = vunpack.c.h.b16 %v524
        %v605 = vunpack.c.l.b16 %v525
        %v606 = vpack.c.b16 %v561, %v558
        %v607 = vpack.c.b16 %v562, %v559
        %v608 = vpack.c.b16 %v563, %v560
        %v609 = vpack.c.b16 %v567, %v564
        %v610 = vpack.c.b16 %v568, %v565
        %v611 = vpack.c.b16 %v569, %v566
        %v612 = vpack.c.b16 %v573, %v570
        %v613 = vpack.c.b16 %v574, %v571
        %v614 = vpack.c.b16 %v575, %v572
        %v615 = vpack.c.b16 %v579, %v576
        %v616 = vpack.c.b16 %v580, %v577
        %v617 = vpack.c.b16 %v581, %v578
        %v618 = vpack.c.b16 %v585, %v582
        %v619 = vpack.c.b16 %v586, %v583
        %v620 = vpack.c.b16 %v587, %v584
        %v621 = vpack.c.b16 %v591, %v588
        %v622 = vpack.c.b16 %v592, %v589
        %v623 = vpack.c.b16 %v593, %v590
        %v624 = vpack.c.b16 %v597, %v594
        %v625 = vpack.c.b16 %v598, %v595
        %v626 = vpack.c.b16 %v599, %v596
        %v627 = vpack.c.b16 %v603, %v600
        %v628 = vpack.c.b16 %v604, %v601
        %v629 = vpack.c.b16 %v605, %v602
        %654 = vmatprep.subr.bf16.mxu0 %v607
        %655 = vmatpush1.bf16.msra.mxu0 %v606
        %656 = vmatprep.subr.bf16.mxu0 %v610
        %657 = vmatpush1.bf16.msra.mxu0 %v609
        %658 = vmatprep.subr.bf16.mxu0 %v613
        %659 = vmatpush1.bf16.msra.mxu0 %v612
        %660 = vmatprep.subr.bf16.mxu0 %v616
        %661 = vmatpush1.bf16.msra.mxu0 %v615
        %662 = vmatprep.subr.bf16.mxu0 %v619
        %663 = vmatpush1.bf16.msra.mxu0 %v618
        %664 = vmatprep.subr.bf16.mxu0 %v622
        %665 = vmatpush1.bf16.msra.mxu0 %v621
        %666 = vmatprep.subr.bf16.mxu0 %v625
        %667 = vmatpush1.bf16.msra.mxu0 %v624
        %668 = vmatprep.subr.bf16.mxu0 %v628
        %669 = vmatpush1.bf16.msra.mxu0 %v627
        %670 = vmatprep.subr.bf16.mxu0 0
        %671 = vmatpush1.bf16.msra.mxu0 0
        %672 = vmatprep.subr.bf16.mxu0 0
        %673 = vmatpush1.bf16.msra.mxu0 0
        %674 = vmatprep.subr.bf16.mxu0 0
        %675 = vmatpush1.bf16.msra.mxu0 0
        %676 = vmatprep.subr.bf16.mxu0 0
        %677 = vmatpush1.bf16.msra.mxu0 0
        %678 = vmatprep.subr.bf16.mxu0 0
        %679 = vmatpush1.bf16.msra.mxu0 0
        %680 = vmatprep.subr.bf16.mxu0 0
        %681 = vmatpush1.bf16.msra.mxu0 0
        %682 = vmatprep.subr.bf16.mxu0 0
        %683 = vmatpush1.bf16.msra.mxu0 0
        %684 = vmatprep.subr.bf16.mxu0 0
        %685 = vmatpush1.bf16.msra.mxu0 0
        %686 = vmatprep.mubr.bf16.mxu0 0
        %687 = vmatmul.mubr.bf16.gmra.mrb[0].mxu0 %v490
        %v688 = vpop.f32.mrb[0].mxu0
        %v689 = vadd.f32 0.0, %v688
        %v690 = vpop.f32.mrb[0].mxu0
        %v691 = vadd.f32 0.0, %v690
        %v692 = vpop.f32.mrb[0].mxu0
        %v693 = vpop.f32.mrb[0].mxu0
        %694 = vdwg.mxu0
        %695 = vmatprep.subr.bf16.mxu0 0
        %696 = vmatpush1.bf16.msra.mxu0 %v608
        %697 = vmatprep.subr.bf16.mxu0 0
        %698 = vmatpush1.bf16.msra.mxu0 %v611
        %699 = vmatprep.subr.bf16.mxu0 0
        %700 = vmatpush1.bf16.msra.mxu0 %v614
        %701 = vmatprep.subr.bf16.mxu0 0
        %702 = vmatpush1.bf16.msra.mxu0 %v617
        %703 = vmatprep.subr.bf16.mxu0 0
        %704 = vmatpush1.bf16.msra.mxu0 %v620
        %705 = vmatprep.subr.bf16.mxu0 0
        %706 = vmatpush1.bf16.msra.mxu0 %v623
        %707 = vmatprep.subr.bf16.mxu0 0
        %708 = vmatpush1.bf16.msra.mxu0 %v626
        %709 = vmatprep.subr.bf16.mxu0 0
        %710 = vmatpush1.bf16.msra.mxu0 %v629
        %711 = vmatprep.subr.bf16.mxu0 0
        %712 = vmatpush1.bf16.msra.mxu0 0
        %713 = vmatprep.subr.bf16.mxu0 0
        %714 = vmatpush1.bf16.msra.mxu0 0
        %715 = vmatprep.subr.bf16.mxu0 0
        %716 = vmatpush1.bf16.msra.mxu0 0
        %717 = vmatprep.subr.bf16.mxu0 0
        %718 = vmatpush1.bf16.msra.mxu0 0
        %719 = vmatprep.subr.bf16.mxu0 0
        %720 = vmatpush1.bf16.msra.mxu0 0
        %721 = vmatprep.subr.bf16.mxu0 0
        %722 = vmatpush1.bf16.msra.mxu0 0
        %723 = vmatprep.subr.bf16.mxu0 0
        %724 = vmatpush1.bf16.msra.mxu0 0
        %725 = vmatprep.subr.bf16.mxu0 0
        %726 = vmatpush1.bf16.msra.mxu0 0
        %727 = vmatprep.mubr.bf16.mxu0 0
        %728 = vmatmul.mubr.bf16.gmra.mrb[0].mxu0 %v490
        %v729 = vpop.f32.mrb[0].mxu0
        %v730 = vadd.f32 0.0, %v729
        %v731 = vpop.f32.mrb[0].mxu0
        %v732 = vpop.f32.mrb[0].mxu0
        %v733 = vpop.f32.mrb[0].mxu0
        %734 = vdwg.mxu0
        %v735 = vadd.f32 %v491, %v689
        %v736 = vadd.f32 %v492, %v691
        %v737 = vadd.f32 %v493, %v730
        %738 = vst [vmem:[#allocation2] sm:$0xff] %v735
        %739 = vst [vmem:[#allocation2 + $0x8] sm:$0xff] %v736
        %740 = vst [vmem:[#allocation2 + $0x10] sm:$0xff] %v737
        %p741 = scmp.eq.s32.totalorder %s33, 2
        // Predicated region
        $region69: #{tpu_custom_call.1} parent=47 // pred_check
          %p742 = pneg %p741
        $region70: #{tpu_custom_call.1} parent=47 // pred_check_branch
          %744 = sbr.rel (%p742) target = $region72
        $region71: #{tpu_custom_call.1} parent=47 // pred_region
          %v745 = vld [vmem:[#allocation2] sm:$0xff]
          %v746 = vld [vmem:[#allocation2 + $0x8] sm:$0xff]
          %v747 = vld [vmem:[#allocation2 + $0x10] sm:$0xff]
          %v748 = vld [vmem:[%s4] sm:$0x7]
          %v750 = vlaneseq
          %v751 = vshrl.u32 %v750, 7
          %v752 = vsub.s32 0, %v751
          %v753 = vrot.slane %v748, %v752
          %v754 = vlaneseq
          %v755 = vshrl.u32 %v754, 7
          %v756 = vsub.s32 1, %v755
          %v757 = vrot.slane %v748, %v756
          %v758 = vlaneseq
          %v759 = vshrl.u32 %v758, 7
          %v760 = vsub.s32 2, %v759
          %v761 = vrot.slane %v748, %v760
          %v765 = vadd.f32 %v745, %v753
          %v766 = vadd.f32 %v746, %v757
          %v767 = vadd.f32 %v747, %v761
          %v768 = vmax.f32 %v765, 0.0
          %v769 = vmax.f32 %v766, 0.0
          %v770 = vtanh.pop %v767
          %v771 = vpack.c.bf16 %v768, %v768
          %v772 = vpack.c.bf16 %v769, %v769
          %v773 = vld [vmem:[#allocation9] sm:$0xf]
          %v774 = vld [vmem:[#allocation9 + $0x4] sm:$0xf]
          %v775 = vld [vmem:[#allocation9 + $0x8] sm:$0xf]
          %v776 = vld [vmem:[#allocation9 + $0xc] sm:$0xf]
          %v777 = vld [vmem:[#allocation9 + $0x10] sm:$0xf]
          %v778 = vld [vmem:[#allocation9 + $0x14] sm:$0xf]
          %v779 = vld [vmem:[#allocation9 + $0x18] sm:$0xf]
          %v780 = vld [vmem:[#allocation9 + $0x1c] sm:$0xf]
          %v781 = vld [vmem:[#allocation9 + $0x20] sm:$0xf]
          %v782 = vld [vmem:[#allocation9 + $0x24] sm:$0xf]
          %v783 = vld [vmem:[#allocation9 + $0x28] sm:$0xf]
          %v784 = vld [vmem:[#allocation9 + $0x2c] sm:$0xf]
          %v785 = vld [vmem:[#allocation9 + $0x30] sm:$0xf]
          %v786 = vld [vmem:[#allocation9 + $0x34] sm:$0xf]
          %v787 = vld [vmem:[#allocation9 + $0x38] sm:$0xf]
          %v788 = vld [vmem:[#allocation9 + $0x3c] sm:$0xf]
          %v789 = vld [vmem:[#allocation9 + $0x40] sm:$0xf]
          %v790 = vld [vmem:[#allocation9 + $0x44] sm:$0xf]
          %v791 = vld [vmem:[#allocation9 + $0x48] sm:$0xf]
          %v792 = vld [vmem:[#allocation9 + $0x4c] sm:$0xf]
          %v793 = vld [vmem:[#allocation9 + $0x50] sm:$0xf]
          %v794 = vld [vmem:[#allocation9 + $0x54] sm:$0xf]
          %v795 = vld [vmem:[#allocation9 + $0x58] sm:$0xf]
          %v796 = vld [vmem:[#allocation9 + $0x5c] sm:$0xf]
          %v797 = vld [vmem:[#allocation9 + $0x60] sm:$0xf]
          %v798 = vld [vmem:[#allocation9 + $0x64] sm:$0xf]
          %v799 = vld [vmem:[#allocation9 + $0x68] sm:$0xf]
          %v800 = vld [vmem:[#allocation9 + $0x6c] sm:$0xf]
          %v801 = vld [vmem:[#allocation9 + $0x70] sm:$0xf]
          %v802 = vld [vmem:[#allocation9 + $0x74] sm:$0xf]
          %v803 = vld [vmem:[#allocation9 + $0x78] sm:$0xf]
          %v804 = vld [vmem:[#allocation9 + $0x7c] sm:$0xf]
          %v805 = vld [vmem:[%s6] sm:$0x1]
          %v807 = vlaneseq
          %v808 = vshrl.u32 %v807, 7
          %v809 = vsub.s32 0, %v808
          %v810 = vrot.slane %v805, %v809
          %v844 = vunpack.c.l.b16 %v773
          %v845 = vunpack.c.l.b16 %v774
          %v846 = vunpack.c.l.b16 %v775
          %v847 = vunpack.c.l.b16 %v776
          %v848 = vunpack.c.l.b16 %v777
          %v849 = vunpack.c.l.b16 %v778
          %v850 = vunpack.c.l.b16 %v779
          %v851 = vunpack.c.l.b16 %v780
          %v852 = vunpack.c.l.b16 %v781
          %v853 = vunpack.c.l.b16 %v782
          %v854 = vunpack.c.l.b16 %v783
          %v855 = vunpack.c.l.b16 %v784
          %v856 = vunpack.c.l.b16 %v785
          %v857 = vunpack.c.l.b16 %v786
          %v858 = vunpack.c.l.b16 %v787
          %v859 = vunpack.c.l.b16 %v788
          %v860 = vunpack.c.l.b16 %v789
          %v861 = vunpack.c.l.b16 %v790
          %v862 = vunpack.c.l.b16 %v791
          %v863 = vunpack.c.l.b16 %v792
          %v864 = vunpack.c.l.b16 %v793
          %v865 = vunpack.c.l.b16 %v794
          %v866 = vunpack.c.l.b16 %v795
          %v867 = vunpack.c.l.b16 %v796
          %v868 = vunpack.c.l.b16 %v797
          %v869 = vunpack.c.l.b16 %v798
          %v870 = vunpack.c.l.b16 %v799
          %v871 = vunpack.c.l.b16 %v800
          %v872 = vunpack.c.l.b16 %v801
          %v873 = vunpack.c.l.b16 %v802
          %v874 = vunpack.c.l.b16 %v803
          %v875 = vunpack.c.l.b16 %v804
          %v876 = vpack.c.b16 %v845, %v844
          %v877 = vpack.c.b16 %v847, %v846
          %v878 = vpack.c.b16 %v849, %v848
          %v879 = vpack.c.b16 %v851, %v850
          %v880 = vpack.c.b16 %v853, %v852
          %v881 = vpack.c.b16 %v855, %v854
          %v882 = vpack.c.b16 %v857, %v856
          %v883 = vpack.c.b16 %v859, %v858
          %v884 = vpack.c.b16 %v861, %v860
          %v885 = vpack.c.b16 %v863, %v862
          %v886 = vpack.c.b16 %v865, %v864
          %v887 = vpack.c.b16 %v867, %v866
          %v888 = vpack.c.b16 %v869, %v868
          %v889 = vpack.c.b16 %v871, %v870
          %v890 = vpack.c.b16 %v873, %v872
          %v891 = vpack.c.b16 %v875, %v874
          %908 = vmatprep.subr.bf16.mxu0 0
          %909 = vmatpush1.bf16.msra.mxu0 %v876
          %910 = vmatprep.subr.bf16.mxu0 0
          %911 = vmatpush1.bf16.msra.mxu0 %v877
          %912 = vmatprep.subr.bf16.mxu0 0
          %913 = vmatpush1.bf16.msra.mxu0 %v878
          %914 = vmatprep.subr.bf16.mxu0 0
          %915 = vmatpush1.bf16.msra.mxu0 %v879
          %916 = vmatprep.subr.bf16.mxu0 0
          %917 = vmatpush1.bf16.msra.mxu0 %v880
          %918 = vmatprep.subr.bf16.mxu0 0
          %919 = vmatpush1.bf16.msra.mxu0 %v881
          %920 = vmatprep.subr.bf16.mxu0 0
          %921 = vmatpush1.bf16.msra.mxu0 %v882
          %922 = vmatprep.subr.bf16.mxu0 0
          %923 = vmatpush1.bf16.msra.mxu0 %v883
          %924 = vmatprep.subr.bf16.mxu0 0
          %925 = vmatpush1.bf16.msra.mxu0 %v884
          %926 = vmatprep.subr.bf16.mxu0 0
          %927 = vmatpush1.bf16.msra.mxu0 %v885
          %928 = vmatprep.subr.bf16.mxu0 0
          %929 = vmatpush1.bf16.msra.mxu0 %v886
          %930 = vmatprep.subr.bf16.mxu0 0
          %931 = vmatpush1.bf16.msra.mxu0 %v887
          %932 = vmatprep.subr.bf16.mxu0 0
          %933 = vmatpush1.bf16.msra.mxu0 %v888
          %934 = vmatprep.subr.bf16.mxu0 0
          %935 = vmatpush1.bf16.msra.mxu0 %v889
          %936 = vmatprep.subr.bf16.mxu0 0
          %937 = vmatpush1.bf16.msra.mxu0 %v890
          %938 = vmatprep.subr.bf16.mxu0 0
          %939 = vmatpush1.bf16.msra.mxu0 %v891
          %940 = vmatprep.mubr.bf16.mxu0 %v772
          %941 = vmatmul.mubr.bf16.gmra.mrb[0].mxu0 %v771
          %v942 = vpop.f32.mrb[0].mxu0
          %v943 = vadd.f32 %v810, %v942
          %v944 = vpop.f32.mrb[0].mxu0
          %v945 = vpop.f32.mrb[0].mxu0
          %v946 = vpop.f32.mrb[0].mxu0
          %947 = vdwg.mxu0
          %v948 = vtanh.pop %v943
          %v949 = vmul.f32 %v770, %v770
          %950 = vadd.xlane.f32.xlu0 %v949
          %v951 = vpop.xlane.xlu0 %950
          %v952 = vmul.f32 %v948, %v948
          %953 = vadd.xlane.f32.xlu0 %v952
          %v954 = vpop.xlane.xlu0 %953
          %v955 = vmax.f32 %v951, 1e-24
          %v956 = vrsqrt.pop %v955
          %v957 = vmul.f32 %v770, %v956
          %v958 = vmax.f32 %v954, 1e-24
          %v959 = vrsqrt.pop %v958
          %v960 = vmul.f32 %v948, %v959
          %961 = vst [vmem:[%s408] sm:$0xff] %v957
          %962 = vst [vmem:[%s408 + $0x8] sm:$0xff] %v960
        $region72: #{tpu_custom_call.1} parent=47 // pred_fallthru
          _
        %s963 = sand.u32 %s215, 1
        %s964 = scalar_lea.sflag [#allocation5], %s963
        %s965 = sand.u32 %s215, 1
        %s966 = smul.addr %s965, 16
        %s967 = scalar_lea.vmem [#allocation11], %s966
        // Predicated region
        $region73: #{tpu_custom_call.1} parent=47 // pred_check
          %p968 = pneg %p225
        $region74: #{tpu_custom_call.1} parent=47 // pred_check_branch
          %970 = sbr.rel (%p968) target = $region76
        $region75: #{tpu_custom_call.1} parent=47 // pred_region
          %s972 = ssub.s32 256, 256
          %973 = vsyncadd %s964, %s972
          %s974 = smul.addr %s32, 2
          %s975 = smul.addr %s974, 128
          %s976 = scalar_lea.hbm %s7, %s975
          %s978 = sshll.u32 %s967, 4
          %s979 = int_to_ptr.vmem [resolvable:$true] %s978
          %981 = dma.vmem_to_hbm [thread:$0]  %s979, 256, %s976, %s964
        $region76: #{tpu_custom_call.1} parent=47 // pred_fallthru
          _
      $region48: #{tpu_custom_call.1} parent=5 // pred_fallthru
        _
      %p982 = scmp.le.s32.totalorder 2, %s23
      // Predicated region
      $region77: #{tpu_custom_call.1} parent=5 // pred_check
        %p983 = pneg %p982
      $region78: #{tpu_custom_call.1} parent=5 // pred_check_branch
        %985 = sbr.rel (%p983) target = $region80
      $region79: #{tpu_custom_call.1} parent=5 // pred_region
        %s986 = ssub.s32 %s23, 2
        // Predicated region
        $region81: #{tpu_custom_call.1} parent=79 // pred_check
          %p987 = pneg %p231
        $region82: #{tpu_custom_call.1} parent=79 // pred_check_branch
          %989 = sbr.rel (%p987) target = $region84
        $region83: #{tpu_custom_call.1} parent=79 // pred_region
          %s990 = sand.u32 %s216, 1
          %s991 = scalar_lea.sflag [#allocation5], %s990
          %s992 = sand.u32 %s216, 1
          %s993 = smul.addr %s992, 16
          %s994 = scalar_lea.vmem [#allocation11], %s993
          %995 = dma.done %s991, 256
        $region84: #{tpu_custom_call.1} parent=79 // pred_fallthru
          _
      $region80: #{tpu_custom_call.1} parent=5 // pred_fallthru
        _
    $region6: #{tpu_custom_call.1} parent=1 // loop_footer
      %s27 = sadd.s32 1, %s23
    $region7: #{tpu_custom_call.1} parent=1 // loop_footer_branch
      %22 = sbr.rel target = $region3
    $region8: #{tpu_custom_call.1} parent=1 // loop_exit
      _
    %996 = vsyncpa [#allocation4], 1
    %s997 = scalar_lea.sflag [#allocation4], 1
    %998 = vsyncpa %s997, 1
    %999 = vsyncpa [#allocation7], 1
    %s1000 = scalar_lea.sflag [#allocation7], 1
    %1001 = vsyncpa %s1000, 1
    %1002 = vsyncpa [#allocation10], 1
    %1003 = vsyncpa [#allocation5], 1
    %s1004 = scalar_lea.sflag [#allocation5], 1
    %1005 = vsyncpa %s1004, 1

</llo_original>
